<compile_context>
chip_gen: v5e
topology: v5e:2x2
jax: 0.10.0
libtpu: 0.0.40
codegen_flags: <defaults>
</compile_context>

<pallas_src>
import jax
import jax.numpy as jnp
from jax.experimental import pallas as pl
from jax.experimental.pallas import tpu as pltpu

IN_FEATURES = 28 * 28      # 784, implied by x.view(-1, 28*28)


def _leaky_relu(x, slope=0.2):
    return jnp.where(x > 0, x, slope * x)


def _round_up(v, m):
    return (v + m - 1) // m * m


def discriminator_kernel(x_ref,
                         w1_ref, b1_ref,
                         w2_ref, b2_ref,
                         w3_ref, b3_ref,
                         w4_ref, b4_ref,
                         out_ref):
    # x arrives in its HBM dtype (f32 here, unpadded 784 cols); cast to bf16
    # only in VMEM so HBM traffic stays minimal and the MXU runs at bf16 rate.
    x = x_ref[...].astype(jnp.bfloat16)

    h = jnp.dot(x, w1_ref[...], preferred_element_type=jnp.float32) + b1_ref[...]
    h = _leaky_relu(h)
    # dropout(p=0.3) -> identity in eval mode

    h = jnp.dot(h.astype(jnp.bfloat16), w2_ref[...],
                preferred_element_type=jnp.float32) + b2_ref[...]
    h = _leaky_relu(h)

    h = jnp.dot(h.astype(jnp.bfloat16), w3_ref[...],
                preferred_element_type=jnp.float32) + b3_ref[...]
    h = _leaky_relu(h)

    # Final layer has N=1: VPU multiply + lane reduction instead of an MXU pass.
    # w4_ref is the (1, hidden) f32 row, b4_ref is (1, 1).
    out = jnp.sum(h * w4_ref[...], axis=-1, keepdims=True) + b4_ref[...]
    out_ref[...] = out.astype(out_ref.dtype)


def discriminator_forward(x, packed_params, tile_b=1024):
    """x: any shape whose total size is a multiple of 784 (e.g. (B,1,28,28))."""
    x2d = x.reshape(-1, IN_FEATURES)
    B = x2d.shape[0]

    # >=2 grid steps whenever possible (so v7x's two TensorCores both get
    # work); tile_b kept a multiple of 16 (bf16 sublane packing).  For tiny
    # batches use one full-array block (no padding, no partial block).
    tile_b = min(tile_b, _round_up(pl.cdiv(B, 2), 16))
    if tile_b >= B:
        tile_b = B
    n_tiles = pl.cdiv(B, tile_b)

    weights = (packed_params["w1"], packed_params["b1"],
               packed_params["w2"], packed_params["b2"],
               packed_params["w3"], packed_params["b3"],
               packed_params["w4"], packed_params["b4"])

    # Constant index_maps -> weights/biases stay VMEM-resident across the grid.
    def resident(w):
        return pl.BlockSpec(w.shape, lambda i: (0, 0))

    in_specs = [pl.BlockSpec((tile_b, IN_FEATURES), lambda i: (i, 0))]
    in_specs += [resident(w) for w in weights]
    out_spec = pl.BlockSpec((tile_b, 1), lambda i: (i, 0))

    d1 = packed_params["w1"].shape[1]
    d2 = packed_params["w2"].shape[1]
    d3 = packed_params["w3"].shape[1]
    flops = 2 * n_tiles * tile_b * (IN_FEATURES * d1 + d1 * d2 + d2 * d3 + d3)
    bytes_accessed = (int(x2d.size) * x2d.dtype.itemsize
                      + sum(int(w.size) * w.dtype.itemsize for w in weights)
                      + B * 4)

    out = pl.pallas_call(
        discriminator_kernel,
        out_shape=jax.ShapeDtypeStruct((B, 1), jnp.float32),
        grid=(n_tiles,),
        in_specs=in_specs,
        out_specs=out_spec,
        compiler_params=pltpu.CompilerParams(
            dimension_semantics=("parallel",)),
        cost_estimate=pl.CostEstimate(
            flops=flops, transcendentals=0, bytes_accessed=bytes_accessed),
    )(x2d, *weights)

    return out


def init_params(key, input_size, hidden_dim, output_size):
    """Deterministic init; weights stored (in, out) = PyTorch weight.T, f32."""
    dims = [
        (input_size, hidden_dim * 4),
        (hidden_dim * 4, hidden_dim * 2),
        (hidden_dim * 2, hidden_dim),
        (hidden_dim, output_size),
    ]
    params = {}
    for i, (fan_in, fan_out) in enumerate(dims, start=1):
        key, kw, kb = jax.random.split(key, 3)
        bound = fan_in ** -0.5
        params[f"w{i}"] = jax.random.uniform(
            kw, (fan_in, fan_out), jnp.float32, -bound, bound)
        params[f"b{i}"] = jax.random.uniform(
            kb, (1, fan_out), jnp.float32, -bound, bound)
    return params


def pack_params(params):
    """Convert f32 (in,out) params to the kernel layout (bf16 matmul weights)."""
    return {
        "w1": params["w1"].astype(jnp.bfloat16),
        "b1": params["b1"],
        "w2": params["w2"].astype(jnp.bfloat16),
        "b2": params["b2"],
        "w3": params["w3"].astype(jnp.bfloat16),
        "b3": params["b3"],
        # Final layer as a (1, hidden) f32 row for the VPU mul + lane reduce.
        "w4": params["w4"].T,
        "b4": params["b4"],
    }


if __name__ == "__main__":
    key = jax.random.PRNGKey(0)
    k_x, k_p = jax.random.split(key)

    input_size = 28 * 28     # 784
    hidden_dim = 32
    output_size = 1
    batch = 4

    x = jax.random.normal(k_x, (batch, 1, 28, 28), jnp.float32)
    params = init_params(k_p, input_size, hidden_dim, output_size)
    packed = pack_params(params)

    out = discriminator_forward(x, packed)
    jax.block_until_ready(out)

    # Pure-JAX f32 reference (same math, outside Pallas). bf16 weights/x in
    # the kernel -> tolerance loosened vs strict f32 parity.
    h = x.reshape(-1, 784)
    for i in range(1, 4):
        h = h @ params[f"w{i}"] + params[f"b{i}"]
        h = jnp.where(h > 0, h, 0.2 * h)
    ref = h @ params["w4"] + params["b4"]

    assert out.shape == (batch, output_size)
    assert jnp.allclose(out, ref, atol=5e-2, rtol=5e-2), (
        jnp.max(jnp.abs(out - ref)))

    print("KERNEL_OK")
</pallas_src>

<mosaic_0001>
module attributes {stable_mosaic.version = 11 : i64} {
  func.func @discriminator_kernel(%arg0: i32, %arg1: memref<4x784xf32, #tpu.memory_space<vmem>>, %arg2: memref<784x128xbf16, #tpu.memory_space<vmem>>, %arg3: memref<1x128xf32, #tpu.memory_space<vmem>>, %arg4: memref<128x64xbf16, #tpu.memory_space<vmem>>, %arg5: memref<1x64xf32, #tpu.memory_space<vmem>>, %arg6: memref<64x32xbf16, #tpu.memory_space<vmem>>, %arg7: memref<1x32xf32, #tpu.memory_space<vmem>>, %arg8: memref<1x32xf32, #tpu.memory_space<vmem>>, %arg9: memref<1x1xf32, #tpu.memory_space<vmem>>, %arg10: memref<4x1xf32, #tpu.memory_space<vmem>>) attributes {dimension_semantics = [#tpu.dimension_semantics<parallel>], iteration_bounds = array<i64: 1>, scalar_prefetch = 0 : i64, scratch_operands = 0 : i64, tpu.core_type = #tpu.core_type<tc>, window_params = [{transform_indices = @transform_0, window_bounds = array<i64: 4, 784>}, {pipeline_mode = #tpu.pipeline_mode<synchronous>, transform_indices = @transform_1, window_bounds = array<i64: 784, 128>}, {pipeline_mode = #tpu.pipeline_mode<synchronous>, transform_indices = @transform_2, window_bounds = array<i64: 1, 128>}, {pipeline_mode = #tpu.pipeline_mode<synchronous>, transform_indices = @transform_3, window_bounds = array<i64: 128, 64>}, {pipeline_mode = #tpu.pipeline_mode<synchronous>, transform_indices = @transform_4, window_bounds = array<i64: 1, 64>}, {pipeline_mode = #tpu.pipeline_mode<synchronous>, transform_indices = @transform_5, window_bounds = array<i64: 64, 32>}, {pipeline_mode = #tpu.pipeline_mode<synchronous>, transform_indices = @transform_6, window_bounds = array<i64: 1, 32>}, {pipeline_mode = #tpu.pipeline_mode<synchronous>, transform_indices = @transform_7, window_bounds = array<i64: 1, 32>}, {pipeline_mode = #tpu.pipeline_mode<synchronous>, transform_indices = @transform_8, window_bounds = array<i64: 1, 1>}, {transform_indices = @transform_9, window_bounds = array<i64: 4, 1>}]} {
    %c0 = arith.constant 0 : index
    %c0_0 = arith.constant 0 : index
    %0 = vector.load %arg1[%c0, %c0_0] : memref<4x784xf32, #tpu.memory_space<vmem>>, vector<4x784xf32>
    %1 = arith.truncf %0 : vector<4x784xf32> to vector<4x784xbf16>
    %c0_1 = arith.constant 0 : index
    %c0_2 = arith.constant 0 : index
    %2 = vector.load %arg2[%c0_1, %c0_2] : memref<784x128xbf16, #tpu.memory_space<vmem>>, vector<784x128xbf16>
    %cst = arith.constant dense<0.000000e+00> : vector<4x128xf32>
    %3 = tpu.matmul %1, %2, %cst {dimension_numbers = #tpu.dot_dimension_numbers<[1], [0], [0], [1], [0, 0, 1, 1], [], []>} : vector<4x784xbf16>, vector<784x128xbf16>, vector<4x128xf32> -> vector<4x128xf32>
    %c0_3 = arith.constant 0 : index
    %c0_4 = arith.constant 0 : index
    %4 = vector.load %arg3[%c0_3, %c0_4] : memref<1x128xf32, #tpu.memory_space<vmem>>, vector<1x128xf32>
    %5 = vector.broadcast %4 : vector<1x128xf32> to vector<4x128xf32>
    %6 = arith.addf %3, %5 : vector<4x128xf32>
    %cst_5 = arith.constant 0.000000e+00 : f32
    %7 = vector.broadcast %cst_5 : f32 to vector<4x128xf32>
    %8 = arith.cmpf ogt, %6, %7 : vector<4x128xf32>
    %cst_6 = arith.constant 2.000000e-01 : f32
    %9 = vector.broadcast %cst_6 : f32 to vector<4x128xf32>
    %10 = arith.mulf %9, %6 : vector<4x128xf32>
    %11 = arith.select %8, %6, %10 : vector<4x128xi1>, vector<4x128xf32>
    %12 = arith.truncf %11 : vector<4x128xf32> to vector<4x128xbf16>
    %c0_7 = arith.constant 0 : index
    %c0_8 = arith.constant 0 : index
    %13 = vector.load %arg4[%c0_7, %c0_8] : memref<128x64xbf16, #tpu.memory_space<vmem>>, vector<128x64xbf16>
    %cst_9 = arith.constant dense<0.000000e+00> : vector<4x64xf32>
    %14 = tpu.matmul %12, %13, %cst_9 {dimension_numbers = #tpu.dot_dimension_numbers<[1], [0], [0], [1], [0, 0, 1, 1], [], []>} : vector<4x128xbf16>, vector<128x64xbf16>, vector<4x64xf32> -> vector<4x64xf32>
    %c0_10 = arith.constant 0 : index
    %c0_11 = arith.constant 0 : index
    %15 = vector.load %arg5[%c0_10, %c0_11] : memref<1x64xf32, #tpu.memory_space<vmem>>, vector<1x64xf32>
    %16 = vector.broadcast %15 : vector<1x64xf32> to vector<4x64xf32>
    %17 = arith.addf %14, %16 : vector<4x64xf32>
    %cst_12 = arith.constant 0.000000e+00 : f32
    %18 = vector.broadcast %cst_12 : f32 to vector<4x64xf32>
    %19 = arith.cmpf ogt, %17, %18 : vector<4x64xf32>
    %cst_13 = arith.constant 2.000000e-01 : f32
    %20 = vector.broadcast %cst_13 : f32 to vector<4x64xf32>
    %21 = arith.mulf %20, %17 : vector<4x64xf32>
    %22 = arith.select %19, %17, %21 : vector<4x64xi1>, vector<4x64xf32>
    %23 = arith.truncf %22 : vector<4x64xf32> to vector<4x64xbf16>
    %c0_14 = arith.constant 0 : index
    %c0_15 = arith.constant 0 : index
    %24 = vector.load %arg6[%c0_14, %c0_15] : memref<64x32xbf16, #tpu.memory_space<vmem>>, vector<64x32xbf16>
    %cst_16 = arith.constant dense<0.000000e+00> : vector<4x32xf32>
    %25 = tpu.matmul %23, %24, %cst_16 {dimension_numbers = #tpu.dot_dimension_numbers<[1], [0], [0], [1], [0, 0, 1, 1], [], []>} : vector<4x64xbf16>, vector<64x32xbf16>, vector<4x32xf32> -> vector<4x32xf32>
    %c0_17 = arith.constant 0 : index
    %c0_18 = arith.constant 0 : index
    %26 = vector.load %arg7[%c0_17, %c0_18] : memref<1x32xf32, #tpu.memory_space<vmem>>, vector<1x32xf32>
    %27 = vector.broadcast %26 : vector<1x32xf32> to vector<4x32xf32>
    %28 = arith.addf %25, %27 : vector<4x32xf32>
    %cst_19 = arith.constant 0.000000e+00 : f32
    %29 = vector.broadcast %cst_19 : f32 to vector<4x32xf32>
    %30 = arith.cmpf ogt, %28, %29 : vector<4x32xf32>
    %cst_20 = arith.constant 2.000000e-01 : f32
    %31 = vector.broadcast %cst_20 : f32 to vector<4x32xf32>
    %32 = arith.mulf %31, %28 : vector<4x32xf32>
    %33 = arith.select %30, %28, %32 : vector<4x32xi1>, vector<4x32xf32>
    %c0_21 = arith.constant 0 : index
    %c0_22 = arith.constant 0 : index
    %34 = vector.load %arg8[%c0_21, %c0_22] : memref<1x32xf32, #tpu.memory_space<vmem>>, vector<1x32xf32>
    %35 = vector.broadcast %34 : vector<1x32xf32> to vector<4x32xf32>
    %36 = arith.mulf %33, %35 : vector<4x32xf32>
    %cst_23 = arith.constant dense<0.000000e+00> : vector<4xf32>
    %37 = vector.multi_reduction <add>, %36, %cst_23 [1] : vector<4x32xf32> to vector<4xf32>
    %38 = vector.shape_cast %37 : vector<4xf32> to vector<4x1xf32>
    %c0_24 = arith.constant 0 : index
    %c0_25 = arith.constant 0 : index
    %39 = vector.load %arg9[%c0_24, %c0_25] : memref<1x1xf32, #tpu.memory_space<vmem>>, vector<1x1xf32>
    %40 = vector.broadcast %39 : vector<1x1xf32> to vector<4x1xf32>
    %41 = arith.addf %38, %40 : vector<4x1xf32>
    %c0_26 = arith.constant 0 : index
    %c0_27 = arith.constant 0 : index
    %42 = vector.load %arg10[%c0_26, %c0_27] : memref<4x1xf32, #tpu.memory_space<vmem>>, vector<4x1xf32>
    tpu.vector_store %arg10[%c0_26, %c0_27], %41 {strides = array<i32>} : memref<4x1xf32, #tpu.memory_space<vmem>>, vector<4x1xf32>,
    return
  }
  func.func @transform_0(%arg0: i32) -> (i32, i32) {
    %c0_i32 = arith.constant 0 : i32
    %c0_i32_0 = arith.constant 0 : i32
    return %arg0, %c0_i32 : i32, i32
  }
  func.func @transform_1(%arg0: i32) -> (i32, i32) {
    %c0_i32 = arith.constant 0 : i32
    %c0_i32_0 = arith.constant 0 : i32
    %c0_i32_1 = arith.constant 0 : i32
    return %c0_i32, %c0_i32_0 : i32, i32
  }
  func.func @transform_2(%arg0: i32) -> (i32, i32) {
    %c0_i32 = arith.constant 0 : i32
    %c0_i32_0 = arith.constant 0 : i32
    %c0_i32_1 = arith.constant 0 : i32
    return %c0_i32, %c0_i32_0 : i32, i32
  }
  func.func @transform_3(%arg0: i32) -> (i32, i32) {
    %c0_i32 = arith.constant 0 : i32
    %c0_i32_0 = arith.constant 0 : i32
    %c0_i32_1 = arith.constant 0 : i32
    return %c0_i32, %c0_i32_0 : i32, i32
  }
  func.func @transform_4(%arg0: i32) -> (i32, i32) {
    %c0_i32 = arith.constant 0 : i32
    %c0_i32_0 = arith.constant 0 : i32
    %c0_i32_1 = arith.constant 0 : i32
    return %c0_i32, %c0_i32_0 : i32, i32
  }
  func.func @transform_5(%arg0: i32) -> (i32, i32) {
    %c0_i32 = arith.constant 0 : i32
    %c0_i32_0 = arith.constant 0 : i32
    %c0_i32_1 = arith.constant 0 : i32
    return %c0_i32, %c0_i32_0 : i32, i32
  }
  func.func @transform_6(%arg0: i32) -> (i32, i32) {
    %c0_i32 = arith.constant 0 : i32
    %c0_i32_0 = arith.constant 0 : i32
    %c0_i32_1 = arith.constant 0 : i32
    return %c0_i32, %c0_i32_0 : i32, i32
  }
  func.func @transform_7(%arg0: i32) -> (i32, i32) {
    %c0_i32 = arith.constant 0 : i32
    %c0_i32_0 = arith.constant 0 : i32
    %c0_i32_1 = arith.constant 0 : i32
    return %c0_i32, %c0_i32_0 : i32, i32
  }
  func.func @transform_8(%arg0: i32) -> (i32, i32) {
    %c0_i32 = arith.constant 0 : i32
    %c0_i32_0 = arith.constant 0 : i32
    %c0_i32_1 = arith.constant 0 : i32
    return %c0_i32, %c0_i32_0 : i32, i32
  }
  func.func @transform_9(%arg0: i32) -> (i32, i32) {
    %c0_i32 = arith.constant 0 : i32
    %c0_i32_0 = arith.constant 0 : i32
    return %arg0, %c0_i32 : i32, i32
  }
}

</mosaic_0001>

<llo_original>
// kernel: tpu_custom_call.1
$region0: #{tpu_custom_call.1}
  #allocation0 [shape = 'u32[]', space=smem, size = 0x4, offset = 0x4, fixed_abs, tag = 'smem constant byte address 0x4 - core index']
  #allocation1 [shape = 'u32[72,128]{1,0:T(1,128)}', space=vmem, size = 0x9000, scoped, tag = 'internal scratch']
  #allocation2 [shape = 'f32[1,1]{1,0:T(1,128)S(1)}', space=vmem, size = 0x200, scoped, tag = 'scoped memory for tpu_custom_call.1']
  %s0 = inlined_call_operand.vmem [shape: f32[4,784], index: 0, kind: input, shape index: {}]
  %s1 = inlined_call_operand.hbm [shape: bf16[784,128], index: 1, kind: input, shape index: {}]
  %s2 = inlined_call_operand.vmem [shape: f32[1,128], index: 2, kind: input, shape index: {}]
  %s3 = inlined_call_operand.vmem [shape: bf16[128,64], index: 3, kind: input, shape index: {}]
  %s4 = inlined_call_operand.vmem [shape: f32[1,64], index: 4, kind: input, shape index: {}]
  %s5 = inlined_call_operand.vmem [shape: bf16[64,32], index: 5, kind: input, shape index: {}]
  %s6 = inlined_call_operand.vmem [shape: f32[1,32], index: 6, kind: input, shape index: {}]
  %s7 = inlined_call_operand.vmem [shape: f32[1,32], index: 7, kind: input, shape index: {}]
  %s8 = inlined_call_operand.<no memory space> [shape: f32[1,1], index: 8, kind: input, shape index: {}]
  %s9 = inlined_call_operand.vmem [shape: f32[4,1], index: 9, kind: output, shape index: {}]
  %s10 = sld [smem:[#allocation0]]
  $region50: #{tpu_custom_call.1} parent=0
    _
  %s12 = ssub.s32 1, %s10
  %s13 = scalar_select 0, %s12, %s10
  %v14 = vstv %s8
  %15 = vst [vmem:[#allocation2] sm:$0x1] %v14
  $region1: #{tpu_custom_call.1} parent=0
    #allocation3 [shape = 'u8[200704]{0}', space=vmem, size = 0x31000, scoped, tag = 'input window, operand 1, single buffered']
    #allocation4 [shape = 's32[1]{0}', space=sflag, size = 0x4, scoped, tag = 'scoped memory for tpu_custom_call.1']
    %16 = vsyncpa [#allocation4], 0
    // Predicated region
    $region2: #{tpu_custom_call.1} parent=1 // pred_check
      _
    $region3: #{tpu_custom_call.1} parent=1 // pred_check_branch
      %18 = sbr.rel (0) target = $region5
    $region4: #{tpu_custom_call.1} parent=1 // pred_region
      _
    $region5: #{tpu_custom_call.1} parent=1 // pred_fallthru
      _
    // Predicated region
    $region6: #{tpu_custom_call.1} parent=1 // pred_check
      _
    $region7: #{tpu_custom_call.1} parent=1 // pred_check_branch
      %20 = sbr.rel (0) target = $region9
    $region8: #{tpu_custom_call.1} parent=1 // pred_region
      %22 = vsyncadd [#allocation4], 0
      %s23 = sshll.u32 %s1, 4
      %s24 = int_to_ptr.hbm [resolvable:$true] %s23
      %s25 = sshll.u32 [#allocation3], 4
      %s26 = int_to_ptr.vmem [resolvable:$true] %s25
      %31 = dma.hbm_to_vmem [thread:$0]  %s24, 6272, %s26, [#allocation4], 64, 64, 4
    $region9: #{tpu_custom_call.1} parent=1 // pred_fallthru
      _
    // Predicated region
    $region10: #{tpu_custom_call.1} parent=1 // pred_check
      _
    $region11: #{tpu_custom_call.1} parent=1 // pred_check_branch
      %33 = sbr.rel (0) target = $region13
    $region12: #{tpu_custom_call.1} parent=1 // pred_region
      _
    $region13: #{tpu_custom_call.1} parent=1 // pred_fallthru
      _
    // Predicated region
    $region14: #{tpu_custom_call.1} parent=1 // pred_check
      _
    $region15: #{tpu_custom_call.1} parent=1 // pred_check_branch
      %35 = sbr.rel (0) target = $region17
    $region16: #{tpu_custom_call.1} parent=1 // pred_region
      _
    $region17: #{tpu_custom_call.1} parent=1 // pred_fallthru
      _
    // Predicated region
    $region18: #{tpu_custom_call.1} parent=1 // pred_check
      _
    $region19: #{tpu_custom_call.1} parent=1 // pred_check_branch
      %37 = sbr.rel (0) target = $region21
    $region20: #{tpu_custom_call.1} parent=1 // pred_region
      _
    $region21: #{tpu_custom_call.1} parent=1 // pred_fallthru
      _
    // Predicated region
    $region22: #{tpu_custom_call.1} parent=1 // pred_check
      _
    $region23: #{tpu_custom_call.1} parent=1 // pred_check_branch
      %39 = sbr.rel (0) target = $region25
    $region24: #{tpu_custom_call.1} parent=1 // pred_region
      _
    $region25: #{tpu_custom_call.1} parent=1 // pred_fallthru
      _
    // Predicated region
    $region26: #{tpu_custom_call.1} parent=1 // pred_check
      _
    $region27: #{tpu_custom_call.1} parent=1 // pred_check_branch
      %41 = sbr.rel (0) target = $region29
    $region28: #{tpu_custom_call.1} parent=1 // pred_region
      _
    $region29: #{tpu_custom_call.1} parent=1 // pred_fallthru
      _
    // Predicated region
    $region30: #{tpu_custom_call.1} parent=1 // pred_check
      _
    $region31: #{tpu_custom_call.1} parent=1 // pred_check_branch
      %43 = sbr.rel (0) target = $region33
    $region32: #{tpu_custom_call.1} parent=1 // pred_region
      _
    $region33: #{tpu_custom_call.1} parent=1 // pred_fallthru
      _
    // Predicated region
    $region34: #{tpu_custom_call.1} parent=1 // pred_check
      _
    $region35: #{tpu_custom_call.1} parent=1 // pred_check_branch
      %45 = sbr.rel (0) target = $region37
    $region36: #{tpu_custom_call.1} parent=1 // pred_region
      _
    $region37: #{tpu_custom_call.1} parent=1 // pred_fallthru
      _
    // Predicated region
    $region38: #{tpu_custom_call.1} parent=1 // pred_check
      _
    $region39: #{tpu_custom_call.1} parent=1 // pred_check_branch
      %47 = sbr.rel (0) target = $region41
    $region40: #{tpu_custom_call.1} parent=1 // pred_region
      %49 = dma.done [#allocation4], 6272
    $region41: #{tpu_custom_call.1} parent=1 // pred_fallthru
      _
    %v51 = vld [vmem:[%s0] sm:$0xff]
    %v52 = vld [vmem:[%s0 + $0x8] sm:$0xff]
    %v53 = vld [vmem:[%s0 + $0x10] sm:$0xff]
    %v54 = vld [vmem:[%s0 + $0x18] sm:$0xf]
    %59 = vst [vmem:[#allocation1] ss:$2 sm:$0xff] %v51
    %s60 = scalar_lea.vmem [#allocation1], 16
    %61 = vst [vmem:[%s60] ss:$2 sm:$0xff] %v52
    %s62 = scalar_lea.vmem [#allocation1], 32
    %63 = vst [vmem:[%s62] ss:$2 sm:$0xff] %v53
    %s64 = scalar_lea.vmem [#allocation1], 48
    %65 = vst [vmem:[%s64] ss:$2 sm:$0xff] %v54
    %v66 = vld.sshfl [vmem:[#allocation1] sm:$0xff pattern:$0x75316420]
    %v67 = vld.sshfl [vmem:[#allocation1 + $0x8] sm:$0xff pattern:$0x75316420]
    %v68 = vld.sshfl [vmem:[#allocation1 + $0x10] sm:$0xff pattern:$0x75316420]
    %v69 = vld.sshfl [vmem:[#allocation1 + $0x18] sm:$0xff pattern:$0x75316420]
    %v70 = vld.sshfl [vmem:[#allocation1 + $0x20] sm:$0xff pattern:$0x75316420]
    %v71 = vld.sshfl [vmem:[#allocation1 + $0x28] sm:$0xff pattern:$0x75316420]
    %v72 = vld.sshfl [vmem:[#allocation1 + $0x30] sm:$0xff pattern:$0x75316420]
    %v80 = vpack.c.bf16 %v66, %v66
    %v81 = vpack.c.bf16 %v67, %v67
    %v82 = vpack.c.bf16 %v68, %v68
    %v83 = vpack.c.bf16 %v69, %v69
    %v84 = vpack.c.bf16 %v70, %v70
    %v85 = vpack.c.bf16 %v71, %v71
    %v86 = vpack.c.bf16 %v72, %v72
    %v87 = vld [vmem:[#allocation3] sm:$0xf]
    %v88 = vld [vmem:[#allocation3 + $0x4] sm:$0xf]
    %v89 = vld [vmem:[#allocation3 + $0x8] sm:$0xf]
    %v90 = vld [vmem:[#allocation3 + $0xc] sm:$0xf]
    %v91 = vld [vmem:[#allocation3 + $0x10] sm:$0xf]
    %v92 = vld [vmem:[#allocation3 + $0x14] sm:$0xf]
    %v93 = vld [vmem:[#allocation3 + $0x18] sm:$0xf]
    %v94 = vld [vmem:[#allocation3 + $0x1c] sm:$0xf]
    %v95 = vld [vmem:[#allocation3 + $0x20] sm:$0xf]
    %v96 = vld [vmem:[#allocation3 + $0x24] sm:$0xf]
    %v97 = vld [vmem:[#allocation3 + $0x28] sm:$0xf]
    %v98 = vld [vmem:[#allocation3 + $0x2c] sm:$0xf]
    %v99 = vld [vmem:[#allocation3 + $0x30] sm:$0xf]
    %v100 = vld [vmem:[#allocation3 + $0x34] sm:$0xf]
    %v101 = vld [vmem:[#allocation3 + $0x38] sm:$0xf]
    %v102 = vld [vmem:[#allocation3 + $0x3c] sm:$0xf]
    %v103 = vld [vmem:[#allocation3 + $0x40] sm:$0xf]
    %v104 = vld [vmem:[#allocation3 + $0x44] sm:$0xf]
    %v105 = vld [vmem:[#allocation3 + $0x48] sm:$0xf]
    %v106 = vld [vmem:[#allocation3 + $0x4c] sm:$0xf]
    %v107 = vld [vmem:[#allocation3 + $0x50] sm:$0xf]
    %v108 = vld [vmem:[#allocation3 + $0x54] sm:$0xf]
    %v109 = vld [vmem:[#allocation3 + $0x58] sm:$0xf]
    %v110 = vld [vmem:[#allocation3 + $0x5c] sm:$0xf]
    %v111 = vld [vmem:[#allocation3 + $0x60] sm:$0xf]
    %v112 = vld [vmem:[#allocation3 + $0x64] sm:$0xf]
    %v113 = vld [vmem:[#allocation3 + $0x68] sm:$0xf]
    %v114 = vld [vmem:[#allocation3 + $0x6c] sm:$0xf]
    %v115 = vld [vmem:[#allocation3 + $0x70] sm:$0xf]
    %v116 = vld [vmem:[#allocation3 + $0x74] sm:$0xf]
    %v117 = vld [vmem:[#allocation3 + $0x78] sm:$0xf]
    %v118 = vld [vmem:[#allocation3 + $0x7c] sm:$0xf]
    %v119 = vld [vmem:[#allocation3 + $0x80] sm:$0xf]
    %v120 = vld [vmem:[#allocation3 + $0x84] sm:$0xf]
    %v121 = vld [vmem:[#allocation3 + $0x88] sm:$0xf]
    %v122 = vld [vmem:[#allocation3 + $0x8c] sm:$0xf]
    %v123 = vld [vmem:[#allocation3 + $0x90] sm:$0xf]
    %v124 = vld [vmem:[#allocation3 + $0x94] sm:$0xf]
    %v125 = vld [vmem:[#allocation3 + $0x98] sm:$0xf]
    %v126 = vld [vmem:[#allocation3 + $0x9c] sm:$0xf]
    %v127 = vld [vmem:[#allocation3 + $0xa0] sm:$0xf]
    %v128 = vld [vmem:[#allocation3 + $0xa4] sm:$0xf]
    %v129 = vld [vmem:[#allocation3 + $0xa8] sm:$0xf]
    %v130 = vld [vmem:[#allocation3 + $0xac] sm:$0xf]
    %v131 = vld [vmem:[#allocation3 + $0xb0] sm:$0xf]
    %v132 = vld [vmem:[#allocation3 + $0xb4] sm:$0xf]
    %v133 = vld [vmem:[#allocation3 + $0xb8] sm:$0xf]
    %v134 = vld [vmem:[#allocation3 + $0xbc] sm:$0xf]
    %v135 = vld [vmem:[#allocation3 + $0xc0] sm:$0xf]
    %v136 = vld [vmem:[#allocation3 + $0xc4] sm:$0xf]
    %v137 = vld [vmem:[#allocation3 + $0xc8] sm:$0xf]
    %v138 = vld [vmem:[#allocation3 + $0xcc] sm:$0xf]
    %v139 = vld [vmem:[#allocation3 + $0xd0] sm:$0xf]
    %v140 = vld [vmem:[#allocation3 + $0xd4] sm:$0xf]
    %v141 = vld [vmem:[#allocation3 + $0xd8] sm:$0xf]
    %v142 = vld [vmem:[#allocation3 + $0xdc] sm:$0xf]
    %v143 = vld [vmem:[#allocation3 + $0xe0] sm:$0xf]
    %v144 = vld [vmem:[#allocation3 + $0xe4] sm:$0xf]
    %v145 = vld [vmem:[#allocation3 + $0xe8] sm:$0xf]
    %v146 = vld [vmem:[#allocation3 + $0xec] sm:$0xf]
    %v147 = vld [vmem:[#allocation3 + $0xf0] sm:$0xf]
    %v148 = vld [vmem:[#allocation3 + $0xf4] sm:$0xf]
    %v149 = vld [vmem:[#allocation3 + $0xf8] sm:$0xf]
    %v150 = vld [vmem:[#allocation3 + $0xfc] sm:$0xf]
    %v151 = vld [vmem:[#allocation3 + $0x100] sm:$0xf]
    %v152 = vld [vmem:[#allocation3 + $0x104] sm:$0xf]
    %v153 = vld [vmem:[#allocation3 + $0x108] sm:$0xf]
    %v154 = vld [vmem:[#allocation3 + $0x10c] sm:$0xf]
    %v155 = vld [vmem:[#allocation3 + $0x110] sm:$0xf]
    %v156 = vld [vmem:[#allocation3 + $0x114] sm:$0xf]
    %v157 = vld [vmem:[#allocation3 + $0x118] sm:$0xf]
    %v158 = vld [vmem:[#allocation3 + $0x11c] sm:$0xf]
    %v159 = vld [vmem:[#allocation3 + $0x120] sm:$0xf]
    %v160 = vld [vmem:[#allocation3 + $0x124] sm:$0xf]
    %v161 = vld [vmem:[#allocation3 + $0x128] sm:$0xf]
    %v162 = vld [vmem:[#allocation3 + $0x12c] sm:$0xf]
    %v163 = vld [vmem:[#allocation3 + $0x130] sm:$0xf]
    %v164 = vld [vmem:[#allocation3 + $0x134] sm:$0xf]
    %v165 = vld [vmem:[#allocation3 + $0x138] sm:$0xf]
    %v166 = vld [vmem:[#allocation3 + $0x13c] sm:$0xf]
    %v167 = vld [vmem:[#allocation3 + $0x140] sm:$0xf]
    %v168 = vld [vmem:[#allocation3 + $0x144] sm:$0xf]
    %v169 = vld [vmem:[#allocation3 + $0x148] sm:$0xf]
    %v170 = vld [vmem:[#allocation3 + $0x14c] sm:$0xf]
    %v171 = vld [vmem:[#allocation3 + $0x150] sm:$0xf]
    %v172 = vld [vmem:[#allocation3 + $0x154] sm:$0xf]
    %v173 = vld [vmem:[#allocation3 + $0x158] sm:$0xf]
    %v174 = vld [vmem:[#allocation3 + $0x15c] sm:$0xf]
    %v175 = vld [vmem:[#allocation3 + $0x160] sm:$0xf]
    %v176 = vld [vmem:[#allocation3 + $0x164] sm:$0xf]
    %v177 = vld [vmem:[#allocation3 + $0x168] sm:$0xf]
    %v178 = vld [vmem:[#allocation3 + $0x16c] sm:$0xf]
    %v179 = vld [vmem:[#allocation3 + $0x170] sm:$0xf]
    %v180 = vld [vmem:[#allocation3 + $0x174] sm:$0xf]
    %v181 = vld [vmem:[#allocation3 + $0x178] sm:$0xf]
    %v182 = vld [vmem:[#allocation3 + $0x17c] sm:$0xf]
    %v183 = vld [vmem:[#allocation3 + $0x180] sm:$0xf]
    %v184 = vld [vmem:[#allocation3 + $0x184] sm:$0xf]
    %v185 = vld [vmem:[%s2] sm:$0x1]
    %v187 = vperm.slane %v185, 0
    %v287 = vunpack.c.l.b16 %v87
    %v288 = vunpack.c.l.b16 %v88
    %v289 = vunpack.c.l.b16 %v89
    %v290 = vunpack.c.l.b16 %v90
    %v291 = vunpack.c.l.b16 %v91
    %v292 = vunpack.c.l.b16 %v92
    %v293 = vunpack.c.l.b16 %v93
    %v294 = vunpack.c.l.b16 %v94
    %v295 = vunpack.c.l.b16 %v95
    %v296 = vunpack.c.l.b16 %v96
    %v297 = vunpack.c.l.b16 %v97
    %v298 = vunpack.c.l.b16 %v98
    %v299 = vunpack.c.l.b16 %v99
    %v300 = vunpack.c.l.b16 %v100
    %v301 = vunpack.c.l.b16 %v101
    %v302 = vunpack.c.l.b16 %v102
    %v303 = vunpack.c.l.b16 %v103
    %v304 = vunpack.c.l.b16 %v104
    %v305 = vunpack.c.l.b16 %v105
    %v306 = vunpack.c.l.b16 %v106
    %v307 = vunpack.c.l.b16 %v107
    %v308 = vunpack.c.l.b16 %v108
    %v309 = vunpack.c.l.b16 %v109
    %v310 = vunpack.c.l.b16 %v110
    %v311 = vunpack.c.l.b16 %v111
    %v312 = vunpack.c.l.b16 %v112
    %v313 = vunpack.c.l.b16 %v113
    %v314 = vunpack.c.l.b16 %v114
    %v315 = vunpack.c.l.b16 %v115
    %v316 = vunpack.c.l.b16 %v116
    %v317 = vunpack.c.l.b16 %v117
    %v318 = vunpack.c.l.b16 %v118
    %v319 = vunpack.c.l.b16 %v119
    %v320 = vunpack.c.l.b16 %v120
    %v321 = vunpack.c.l.b16 %v121
    %v322 = vunpack.c.l.b16 %v122
    %v323 = vunpack.c.l.b16 %v123
    %v324 = vunpack.c.l.b16 %v124
    %v325 = vunpack.c.l.b16 %v125
    %v326 = vunpack.c.l.b16 %v126
    %v327 = vunpack.c.l.b16 %v127
    %v328 = vunpack.c.l.b16 %v128
    %v329 = vunpack.c.l.b16 %v129
    %v330 = vunpack.c.l.b16 %v130
    %v331 = vunpack.c.l.b16 %v131
    %v332 = vunpack.c.l.b16 %v132
    %v333 = vunpack.c.l.b16 %v133
    %v334 = vunpack.c.l.b16 %v134
    %v335 = vunpack.c.l.b16 %v135
    %v336 = vunpack.c.l.b16 %v136
    %v337 = vunpack.c.l.b16 %v137
    %v338 = vunpack.c.l.b16 %v138
    %v339 = vunpack.c.l.b16 %v139
    %v340 = vunpack.c.l.b16 %v140
    %v341 = vunpack.c.l.b16 %v141
    %v342 = vunpack.c.l.b16 %v142
    %v343 = vunpack.c.l.b16 %v143
    %v344 = vunpack.c.l.b16 %v144
    %v345 = vunpack.c.l.b16 %v145
    %v346 = vunpack.c.l.b16 %v146
    %v347 = vunpack.c.l.b16 %v147
    %v348 = vunpack.c.l.b16 %v148
    %v349 = vunpack.c.l.b16 %v149
    %v350 = vunpack.c.l.b16 %v150
    %v351 = vunpack.c.l.b16 %v151
    %v352 = vunpack.c.l.b16 %v152
    %v353 = vunpack.c.l.b16 %v153
    %v354 = vunpack.c.l.b16 %v154
    %v355 = vunpack.c.l.b16 %v155
    %v356 = vunpack.c.l.b16 %v156
    %v357 = vunpack.c.l.b16 %v157
    %v358 = vunpack.c.l.b16 %v158
    %v359 = vunpack.c.l.b16 %v159
    %v360 = vunpack.c.l.b16 %v160
    %v361 = vunpack.c.l.b16 %v161
    %v362 = vunpack.c.l.b16 %v162
    %v363 = vunpack.c.l.b16 %v163
    %v364 = vunpack.c.l.b16 %v164
    %v365 = vunpack.c.l.b16 %v165
    %v366 = vunpack.c.l.b16 %v166
    %v367 = vunpack.c.l.b16 %v167
    %v368 = vunpack.c.l.b16 %v168
    %v369 = vunpack.c.l.b16 %v169
    %v370 = vunpack.c.l.b16 %v170
    %v371 = vunpack.c.l.b16 %v171
    %v372 = vunpack.c.l.b16 %v172
    %v373 = vunpack.c.l.b16 %v173
    %v374 = vunpack.c.l.b16 %v174
    %v375 = vunpack.c.l.b16 %v175
    %v376 = vunpack.c.l.b16 %v176
    %v377 = vunpack.c.l.b16 %v177
    %v378 = vunpack.c.l.b16 %v178
    %v379 = vunpack.c.l.b16 %v179
    %v380 = vunpack.c.l.b16 %v180
    %v381 = vunpack.c.l.b16 %v181
    %v382 = vunpack.c.l.b16 %v182
    %v383 = vunpack.c.l.b16 %v183
    %v384 = vunpack.c.l.b16 %v184
    %v385 = vpack.c.b16 %v288, %v287
    %v386 = vpack.c.b16 %v290, %v289
    %v387 = vpack.c.b16 %v292, %v291
    %v388 = vpack.c.b16 %v294, %v293
    %v389 = vpack.c.b16 %v296, %v295
    %v390 = vpack.c.b16 %v298, %v297
    %v391 = vpack.c.b16 %v300, %v299
    %v392 = vpack.c.b16 %v302, %v301
    %v393 = vpack.c.b16 %v304, %v303
    %v394 = vpack.c.b16 %v306, %v305
    %v395 = vpack.c.b16 %v308, %v307
    %v396 = vpack.c.b16 %v310, %v309
    %v397 = vpack.c.b16 %v312, %v311
    %v398 = vpack.c.b16 %v314, %v313
    %v399 = vpack.c.b16 %v316, %v315
    %v400 = vpack.c.b16 %v318, %v317
    %v401 = vpack.c.b16 %v320, %v319
    %v402 = vpack.c.b16 %v322, %v321
    %v403 = vpack.c.b16 %v324, %v323
    %v404 = vpack.c.b16 %v326, %v325
    %v405 = vpack.c.b16 %v328, %v327
    %v406 = vpack.c.b16 %v330, %v329
    %v407 = vpack.c.b16 %v332, %v331
    %v408 = vpack.c.b16 %v334, %v333
    %v409 = vpack.c.b16 %v336, %v335
    %v410 = vpack.c.b16 %v338, %v337
    %v411 = vpack.c.b16 %v340, %v339
    %v412 = vpack.c.b16 %v342, %v341
    %v413 = vpack.c.b16 %v344, %v343
    %v414 = vpack.c.b16 %v346, %v345
    %v415 = vpack.c.b16 %v348, %v347
    %v416 = vpack.c.b16 %v350, %v349
    %v417 = vpack.c.b16 %v352, %v351
    %v418 = vpack.c.b16 %v354, %v353
    %v419 = vpack.c.b16 %v356, %v355
    %v420 = vpack.c.b16 %v358, %v357
    %v421 = vpack.c.b16 %v360, %v359
    %v422 = vpack.c.b16 %v362, %v361
    %v423 = vpack.c.b16 %v364, %v363
    %v424 = vpack.c.b16 %v366, %v365
    %v425 = vpack.c.b16 %v368, %v367
    %v426 = vpack.c.b16 %v370, %v369
    %v427 = vpack.c.b16 %v372, %v371
    %v428 = vpack.c.b16 %v374, %v373
    %v429 = vpack.c.b16 %v376, %v375
    %v430 = vpack.c.b16 %v378, %v377
    %v431 = vpack.c.b16 %v380, %v379
    %v432 = vpack.c.b16 %v382, %v381
    %v433 = vpack.c.b16 %v384, %v383
    %vm483 = vcmask 130048
    %v485 = vsel %vm483, %v86, 0
    %487 = vmatpush.bf16.msra.mxu0 %v392
    %488 = vmatpush.bf16.msra.mxu0 %v391
    %489 = vmatpush.bf16.msra.mxu0 %v390
    %490 = vmatpush.bf16.msra.mxu0 %v389
    %491 = vmatpush.bf16.msra.mxu0 %v388
    %492 = vmatpush.bf16.msra.mxu0 %v387
    %493 = vmatpush.bf16.msra.mxu0 %v386
    %494 = vmatpush.bf16.msra.mxu0 %v385
    %495 = vmatmul.bf16.gmra.mxu0 %v80
    %v496 = vpop.f32.mrf.mxu0
    %v497 = vadd.f32 %v187, %v496
    %v498 = vpop.f32.mrf.mxu0
    %499 = vdwg.mxu0
    %500 = vmatpush.bf16.msra.mxu0 %v400
    %501 = vmatpush.bf16.msra.mxu0 %v399
    %502 = vmatpush.bf16.msra.mxu0 %v398
    %503 = vmatpush.bf16.msra.mxu0 %v397
    %504 = vmatpush.bf16.msra.mxu0 %v396
    %505 = vmatpush.bf16.msra.mxu0 %v395
    %506 = vmatpush.bf16.msra.mxu0 %v394
    %507 = vmatpush.bf16.msra.mxu0 %v393
    %508 = vmatmul.bf16.gmra.mxu0 %v81
    %v509 = vpop.f32.mrf.mxu0
    %v510 = vadd.f32 %v497, %v509
    %v511 = vpop.f32.mrf.mxu0
    %512 = vdwg.mxu0
    %513 = vmatpush.bf16.msra.mxu0 %v408
    %514 = vmatpush.bf16.msra.mxu0 %v407
    %515 = vmatpush.bf16.msra.mxu0 %v406
    %516 = vmatpush.bf16.msra.mxu0 %v405
    %517 = vmatpush.bf16.msra.mxu0 %v404
    %518 = vmatpush.bf16.msra.mxu0 %v403
    %519 = vmatpush.bf16.msra.mxu0 %v402
    %520 = vmatpush.bf16.msra.mxu0 %v401
    %521 = vmatmul.bf16.gmra.mxu0 %v82
    %v522 = vpop.f32.mrf.mxu0
    %v523 = vadd.f32 %v510, %v522
    %v524 = vpop.f32.mrf.mxu0
    %525 = vdwg.mxu0
    %526 = vmatpush.bf16.msra.mxu0 %v416
    %527 = vmatpush.bf16.msra.mxu0 %v415
    %528 = vmatpush.bf16.msra.mxu0 %v414
    %529 = vmatpush.bf16.msra.mxu0 %v413
    %530 = vmatpush.bf16.msra.mxu0 %v412
    %531 = vmatpush.bf16.msra.mxu0 %v411
    %532 = vmatpush.bf16.msra.mxu0 %v410
    %533 = vmatpush.bf16.msra.mxu0 %v409
    %534 = vmatmul.bf16.gmra.mxu0 %v83
    %v535 = vpop.f32.mrf.mxu0
    %v536 = vadd.f32 %v523, %v535
    %v537 = vpop.f32.mrf.mxu0
    %538 = vdwg.mxu0
    %539 = vmatpush.bf16.msra.mxu0 %v424
    %540 = vmatpush.bf16.msra.mxu0 %v423
    %541 = vmatpush.bf16.msra.mxu0 %v422
    %542 = vmatpush.bf16.msra.mxu0 %v421
    %543 = vmatpush.bf16.msra.mxu0 %v420
    %544 = vmatpush.bf16.msra.mxu0 %v419
    %545 = vmatpush.bf16.msra.mxu0 %v418
    %546 = vmatpush.bf16.msra.mxu0 %v417
    %547 = vmatmul.bf16.gmra.mxu0 %v84
    %v548 = vpop.f32.mrf.mxu0
    %v549 = vadd.f32 %v536, %v548
    %v550 = vpop.f32.mrf.mxu0
    %551 = vdwg.mxu0
    %552 = vmatpush.bf16.msra.mxu0 %v432
    %553 = vmatpush.bf16.msra.mxu0 %v431
    %554 = vmatpush.bf16.msra.mxu0 %v430
    %555 = vmatpush.bf16.msra.mxu0 %v429
    %556 = vmatpush.bf16.msra.mxu0 %v428
    %557 = vmatpush.bf16.msra.mxu0 %v427
    %558 = vmatpush.bf16.msra.mxu0 %v426
    %559 = vmatpush.bf16.msra.mxu0 %v425
    %560 = vmatmul.bf16.gmra.mxu0 %v85
    %v561 = vpop.f32.mrf.mxu0
    %v562 = vadd.f32 %v549, %v561
    %v563 = vpop.f32.mrf.mxu0
    %564 = vdwg.mxu0
    %565 = vmatpush.bf16.msra.mxu0 0
    %566 = vmatpush.bf16.msra.mxu0 0
    %567 = vmatpush.bf16.msra.mxu0 0
    %568 = vmatpush.bf16.msra.mxu0 0
    %569 = vmatpush.bf16.msra.mxu0 0
    %570 = vmatpush.bf16.msra.mxu0 0
    %571 = vmatpush.bf16.msra.mxu0 0
    %572 = vmatpush.bf16.msra.mxu0 %v433
    %573 = vmatmul.bf16.gmra.mxu0 %v485
    %v574 = vpop.f32.mrf.mxu0
    %v575 = vadd.f32 %v562, %v574
    %v576 = vpop.f32.mrf.mxu0
    %577 = vdwg.mxu0
    %vm578 = vcmp.gt.f32.partialorder %v575, 0.0
    %v579 = vmul.f32 %v575, 0.2
    %v580 = vsel %vm578, %v575, %v579
    %v581 = vpack.c.bf16 %v580, %v580
    %v582 = vld [vmem:[%s3] sm:$0xf]
    %v583 = vld [vmem:[%s3 + $0x4] sm:$0xf]
    %v584 = vld [vmem:[%s3 + $0x8] sm:$0xf]
    %v585 = vld [vmem:[%s3 + $0xc] sm:$0xf]
    %v586 = vld [vmem:[%s3 + $0x10] sm:$0xf]
    %v587 = vld [vmem:[%s3 + $0x14] sm:$0xf]
    %v588 = vld [vmem:[%s3 + $0x18] sm:$0xf]
    %v589 = vld [vmem:[%s3 + $0x1c] sm:$0xf]
    %v590 = vld [vmem:[%s3 + $0x20] sm:$0xf]
    %v591 = vld [vmem:[%s3 + $0x24] sm:$0xf]
    %v592 = vld [vmem:[%s3 + $0x28] sm:$0xf]
    %v593 = vld [vmem:[%s3 + $0x2c] sm:$0xf]
    %v594 = vld [vmem:[%s3 + $0x30] sm:$0xf]
    %v595 = vld [vmem:[%s3 + $0x34] sm:$0xf]
    %v596 = vld [vmem:[%s3 + $0x38] sm:$0xf]
    %v597 = vld [vmem:[%s3 + $0x3c] sm:$0xf]
    %v598 = vld [vmem:[%s4] sm:$0x1]
    %v600 = vperm.slane %v598, 0
    %v618 = vunpack.c.l.b16 %v582
    %v619 = vunpack.c.l.b16 %v583
    %v620 = vunpack.c.l.b16 %v584
    %v621 = vunpack.c.l.b16 %v585
    %v622 = vunpack.c.l.b16 %v586
    %v623 = vunpack.c.l.b16 %v587
    %v624 = vunpack.c.l.b16 %v588
    %v625 = vunpack.c.l.b16 %v589
    %v626 = vunpack.c.l.b16 %v590
    %v627 = vunpack.c.l.b16 %v591
    %v628 = vunpack.c.l.b16 %v592
    %v629 = vunpack.c.l.b16 %v593
    %v630 = vunpack.c.l.b16 %v594
    %v631 = vunpack.c.l.b16 %v595
    %v632 = vunpack.c.l.b16 %v596
    %v633 = vunpack.c.l.b16 %v597
    %v634 = vpack.c.b16 %v619, %v618
    %v635 = vpack.c.b16 %v621, %v620
    %v636 = vpack.c.b16 %v623, %v622
    %v637 = vpack.c.b16 %v625, %v624
    %v638 = vpack.c.b16 %v627, %v626
    %v639 = vpack.c.b16 %v629, %v628
    %v640 = vpack.c.b16 %v631, %v630
    %v641 = vpack.c.b16 %v633, %v632
    %650 = vmatpush.bf16.msra.mxu0 %v641
    %651 = vmatpush.bf16.msra.mxu0 %v640
    %652 = vmatpush.bf16.msra.mxu0 %v639
    %653 = vmatpush.bf16.msra.mxu0 %v638
    %654 = vmatpush.bf16.msra.mxu0 %v637
    %655 = vmatpush.bf16.msra.mxu0 %v636
    %656 = vmatpush.bf16.msra.mxu0 %v635
    %657 = vmatpush.bf16.msra.mxu0 %v634
    %658 = vmatmul.bf16.gmra.mxu0 %v581
    %v659 = vpop.f32.mrf.mxu0
    %v660 = vadd.f32 %v600, %v659
    %v661 = vpop.f32.mrf.mxu0
    %662 = vdwg.mxu0
    %vm663 = vcmp.gt.f32.partialorder %v660, 0.0
    %v664 = vmul.f32 %v660, 0.2
    %v665 = vsel %vm663, %v660, %v664
    %v666 = vpack.c.bf16 %v665, %v665
    %v667 = vld [vmem:[%s5] sm:$0xf]
    %v668 = vld [vmem:[%s5 + $0x4] sm:$0xf]
    %v669 = vld [vmem:[%s5 + $0x8] sm:$0xf]
    %v670 = vld [vmem:[%s5 + $0xc] sm:$0xf]
    %v671 = vld [vmem:[%s5 + $0x10] sm:$0xf]
    %v672 = vld [vmem:[%s5 + $0x14] sm:$0xf]
    %v673 = vld [vmem:[%s5 + $0x18] sm:$0xf]
    %v674 = vld [vmem:[%s5 + $0x1c] sm:$0xf]
    %v675 = vld [vmem:[%s6] sm:$0x1]
    %v677 = vperm.slane %v675, 0
    %v687 = vunpack.c.l.b16 %v667
    %v688 = vunpack.c.l.b16 %v668
    %v689 = vunpack.c.l.b16 %v669
    %v690 = vunpack.c.l.b16 %v670
    %v691 = vunpack.c.l.b16 %v671
    %v692 = vunpack.c.l.b16 %v672
    %v693 = vunpack.c.l.b16 %v673
    %v694 = vunpack.c.l.b16 %v674
    %v695 = vpack.c.b16 %v688, %v687
    %v696 = vpack.c.b16 %v690, %v689
    %v697 = vpack.c.b16 %v692, %v691
    %v698 = vpack.c.b16 %v694, %v693
    %vm703 = vcmask 523264
    %v705 = vsel %vm703, %v666, 0
    %707 = vmatpush.bf16.msra.mxu0 0
    %708 = vmatpush.bf16.msra.mxu0 0
    %709 = vmatpush.bf16.msra.mxu0 0
    %710 = vmatpush.bf16.msra.mxu0 0
    %711 = vmatpush.bf16.msra.mxu0 %v698
    %712 = vmatpush.bf16.msra.mxu0 %v697
    %713 = vmatpush.bf16.msra.mxu0 %v696
    %714 = vmatpush.bf16.msra.mxu0 %v695
    %715 = vmatmul.bf16.gmra.mxu0 %v705
    %v716 = vpop.f32.mrf.mxu0
    %v717 = vadd.f32 %v677, %v716
    %v718 = vpop.f32.mrf.mxu0
    %719 = vdwg.mxu0
    %vm720 = vcmp.gt.f32.partialorder %v717, 0.0
    %v721 = vmul.f32 %v717, 0.2
    %v722 = vsel %vm720, %v717, %v721
    %v723 = vld [vmem:[%s7] sm:$0x1]
    %v725 = vperm.slane %v723, 0
    %v727 = vmul.f32 %v722, %v725
    %vm728 = vcmask 257024
    %v729 = vsel %vm728, %v727, 0.0
    %730 = vadd.xlane.f32.xlu0 %v729
    %v731 = vpop.xlane.xlu0 %730
    %v732 = vld [vmem:[#allocation2] sm:$0x1]
    %v734 = vperm.slane %v732, 0
    %v736 = vadd.f32 %v731, %v734
    %vm737 = vcmask 3072
    %738 = vst.msk [vmem:[%s9] sm:$0xf] %vm737, %v736
    // Predicated region
    $region42: #{tpu_custom_call.1} parent=1 // pred_check
      _
    $region43: #{tpu_custom_call.1} parent=1 // pred_check_branch
      %740 = sbr.rel (0) target = $region45
    $region44: #{tpu_custom_call.1} parent=1 // pred_region
      _
    $region45: #{tpu_custom_call.1} parent=1 // pred_fallthru
      _
    // Predicated region
    $region46: #{tpu_custom_call.1} parent=1 // pred_check
      _
    $region47: #{tpu_custom_call.1} parent=1 // pred_check_branch
      %742 = sbr.rel (0) target = $region49
    $region48: #{tpu_custom_call.1} parent=1 // pred_region
      _
    $region49: #{tpu_custom_call.1} parent=1 // pred_fallthru
      _
    %743 = vsyncpa [#allocation4], 1

</llo_original>
